<compile_context>
chip_gen: v6e
topology: v6e:2x2x1
jax: 0.10.0
libtpu: 0.0.40
codegen_flags: <defaults>
</compile_context>

<pallas_src>
import functools

import jax
import jax.numpy as jnp
from jax.experimental import pallas as pl
from jax.experimental.pallas import tpu as pltpu


# ---------------------------------------------------------------------------
# Kernels
# ---------------------------------------------------------------------------

def _l1linear_kernel_direct(x_ref, w_ref, b_ref, o_ref, *, bias_factor, presub, precision):
    """f32-output variant: accumulate straight into the resident output block."""
    k = pl.program_id(2)

    @pl.when(k == 0)
    def _():
        # Seed the accumulator with the bias term (bias_factor is a static float).
        o_ref[...] = jnp.broadcast_to(b_ref[...] * bias_factor, o_ref.shape).astype(o_ref.dtype)

    # Fused positive/negative weight-half subtraction: both halves are already
    # in VMEM (one DMA), so this is a single VPU subtract under MXU slack.
    w = w_ref[...] if presub else w_ref[0] - w_ref[1]
    o_ref[...] += jnp.dot(x_ref[...], w,
                          preferred_element_type=jnp.float32,
                          precision=precision)


def _l1linear_kernel_acc(x_ref, w_ref, b_ref, o_ref, acc_ref, *, bias_factor, presub, precision):
    """Narrow-output variant: f32 VMEM scratch accumulator, cast in epilogue."""
    k = pl.program_id(2)

    @pl.when(k == 0)
    def _():
        acc_ref[...] = jnp.zeros_like(acc_ref)

    w = w_ref[...] if presub else w_ref[0] - w_ref[1]
    acc_ref[...] += jnp.dot(x_ref[...], w,
                            preferred_element_type=jnp.float32,
                            precision=precision)

    @pl.when(k == pl.num_programs(2) - 1)
    def _():
        o_ref[...] = (acc_ref[...] + b_ref[...] * bias_factor).astype(o_ref.dtype)


# ---------------------------------------------------------------------------
# Tiling helpers
# ---------------------------------------------------------------------------

def _round_up(v, a):
    return -(-v // a) * a


def _pick_tile(dim, preferred, align):
    """Balanced tile: tile % align == 0, tile <= ~preferred, minimal padding.

    Returns (tile, padded_dim) with padded_dim % tile == 0.
    """
    if dim <= preferred:
        t = _round_up(dim, align)
        return t, t
    nblk = -(-dim // preferred)                 # number of blocks
    t = _round_up(-(-dim // nblk), align)       # ceil(dim/nblk) rounded to align
    return t, t * nblk


def _vmem_capacity_bytes():
    try:
        info = pltpu.get_tpu_info()
        for attr in ("vmem_capacity_bytes", "vmem_size_bytes", "vmem_bytes"):
            v = getattr(info, attr, None)
            if v:
                return int(v)
    except Exception:
        pass
    return 64 * 1024 * 1024  # conservative: v7x per-TensorCore VMEM


# ---------------------------------------------------------------------------
# Wrapper
# ---------------------------------------------------------------------------

def l1linear(x, weights_pos_neg, bias, bias_factor=1.0, *,
             tm=None, tn=None, tk=None,
             presubtract=None, compute_dtype=None, precision=None):
    """L1Linear forward (eval / noise_factor == 0).

    x: (M, K); weights_pos_neg: (2K, N); bias: (N,).  Returns (M, N) in x.dtype.
    """
    M, K = x.shape
    K2, N = weights_pos_neg.shape
    assert K2 == 2 * K, "weights_pos_neg must have 2*input_width rows"
    assert bias.shape == (N,)
    out_dtype = x.dtype

    vmem_cap = _vmem_capacity_bytes()

    # Generation-aware tile preferences:
    #   v5e/v6e (128 MiB VMEM): tm=512, tn=1024, tk=512 (~10-14 MiB double-buffered).
    #   v7x (64 MiB per TC):    tn capped at 512 to stay well under the budget.
    tm_pref = 512
    tk_pref = 512
    tn_pref = 1024 if vmem_cap >= (96 << 20) else 512

    if tm is None:
        tm, Mp = _pick_tile(M, tm_pref, 8)
    else:
        Mp = _round_up(M, tm)
    if tk is None:
        tk, Kp = _pick_tile(K, tk_pref, 128)
    else:
        Kp = _round_up(K, tk)
    if tn is None:
        tn, Np = _pick_tile(N, tn_pref, 128)
    else:
        Np = _round_up(N, tn)

    m_blocks, n_blocks, k_blocks = Mp // tm, Np // tn, Kp // tk

    # Pre-subtract the weight halves once when the M grid revisits them often:
    # halves the dominant weight HBM stream (2*K*N -> K*N bytes per M tile).
    # For static inference weights the caller should ideally hoist this to
    # weight-load time; done here it is still a net win for M/tm > 3.
    if presubtract is None:
        presubtract = m_blocks > 3

    # --- Zero-pad to tile multiples (exact for the matmul / bias add) -------
    x_p = x
    if (Mp, Kp) != (M, K):
        x_p = jnp.pad(x, ((0, Mp - M), (0, Kp - K)))

    w3 = weights_pos_neg.reshape(2, K, N)
    if presubtract:
        w_in = w3[0] - w3[1]
        if (Kp, Np) != (K, N):
            w_in = jnp.pad(w_in, ((0, Kp - K), (0, Np - N)))
    else:
        w_in = w3
        if (Kp, Np) != (K, N):
            w_in = jnp.pad(w3, ((0, 0), (0, Kp - K), (0, Np - N)))

    b_in = bias if Np == N else jnp.pad(bias, (0, Np - N))
    b_in = b_in.reshape(1, Np).astype(jnp.float32)

    # --- Optional fast bf16 MXU path (halves X/W HBM traffic and VMEM) ------
    if compute_dtype is not None:
        x_p = x_p.astype(compute_dtype)
        w_in = w_in.astype(compute_dtype)
    if precision is None:
        # Default f32 jnp.dot lowers to truncated-bf16 MXU passes and drifts
        # from the torch f32 matmul; use HIGHEST for f32 inputs.
        precision = (jax.lax.Precision.HIGHEST
                     if jnp.dtype(x_p.dtype) == jnp.float32
                     else jax.lax.Precision.DEFAULT)

    use_acc = jnp.dtype(out_dtype) != jnp.float32

    # --- VMEM budget / compiler params ---------------------------------------
    x_b = jnp.dtype(x_p.dtype).itemsize
    w_b = jnp.dtype(w_in.dtype).itemsize
    o_b = jnp.dtype(out_dtype).itemsize
    w_halves = 1 if presubtract else 2
    vmem_needed = 2 * (tm * tk * x_b + w_halves * tk * tn * w_b + tn * 4 + tm * tn * o_b)
    if use_acc:
        vmem_needed += tm * tn * 4
    vmem_limit = int(min(vmem_cap * 3 // 4, max(vmem_needed + (4 << 20), 32 << 20)))

    # --- Specs ----------------------------------------------------------------
    if presubtract:
        w_spec = pl.BlockSpec((tk, tn), lambda i, j, k: (k, j))
    else:
        w_spec = pl.BlockSpec((2, tk, tn), lambda i, j, k: (0, k, j))
    in_specs = [
        pl.BlockSpec((tm, tk), lambda i, j, k: (i, k)),   # X tile
        w_spec,                                           # weights (one DMA/step)
        pl.BlockSpec((1, tn), lambda i, j, k: (0, j)),    # bias row
    ]
    out_spec = pl.BlockSpec((tm, tn), lambda i, j, k: (i, j))

    if use_acc:
        kern = functools.partial(_l1linear_kernel_acc, bias_factor=float(bias_factor),
                                 presub=presubtract, precision=precision)
        scratch = [pltpu.VMEM((tm, tn), jnp.float32)]
    else:
        kern = functools.partial(_l1linear_kernel_direct, bias_factor=float(bias_factor),
                                 presub=presubtract, precision=precision)
        scratch = []

    out_p = pl.pallas_call(
        kern,
        out_shape=jax.ShapeDtypeStruct((Mp, Np), out_dtype),
        grid_spec=pltpu.PrefetchScalarGridSpec(
            num_scalar_prefetch=0,
            grid=(m_blocks, n_blocks, k_blocks),
            in_specs=in_specs,
            out_specs=out_spec,
            scratch_shapes=scratch,
        ),
        compiler_params=pltpu.CompilerParams(
            dimension_semantics=("parallel", "parallel", "arbitrary"),
            vmem_limit_bytes=vmem_limit,
        ),
    )(x_p, w_in, b_in)

    if (Mp, Np) != (M, N):
        out_p = out_p[:M, :N]
    return out_p
    # TODO(synk): training-time multiplicative weight noise (torch.rand_like *
    # noise_factor) is not implemented; add with pltpu.prng_seed /
    # pltpu.prng_random_bits on the weight tile inside the K-loop if needed.


# ---------------------------------------------------------------------------
# Self-test
# ---------------------------------------------------------------------------

if __name__ == "__main__":
    key = jax.random.PRNGKey(0)

    def make_inputs(k, batch, in_w, out_w):
        k_w, k_x, k_b = jax.random.split(k, 3)
        # Simplex-style init of weights_pos_neg [2*in_w, out_w] (matches module
        # __init__: rand -> log(.+1e-15) -> normalize over dim 0).
        u = jax.random.uniform(k_w, (2 * in_w, out_w), dtype=jnp.float32)
        wpn = jnp.log(u + 1e-15)
        wpn = wpn / jnp.sum(wpn, axis=0, keepdims=True)
        x = jax.random.normal(k_x, (batch, in_w), dtype=jnp.float32)
        # Module inits bias to zeros; perturb so the bias path is exercised.
        b = 0.1 * jax.random.normal(k_b, (out_w,), dtype=jnp.float32)
        return x, wpn, b

    def reference(x, wpn, b, bias_factor):
        in_w = x.shape[1]
        w = wpn[:in_w, :] - wpn[in_w:, :]
        return jnp.matmul(x, w, precision=jax.lax.Precision.HIGHEST) + b[None, :] * bias_factor

    # Case 1: small aligned shapes, fused weight-halves path (single grid step).
    x1, w1, b1 = make_inputs(jax.random.fold_in(key, 1), 16, 32, 128)
    out1 = jax.block_until_ready(l1linear(x1, w1, b1, bias_factor=0.5))
    ref1 = reference(x1, w1, b1, 0.5)
    assert out1.shape == ref1.shape and out1.dtype == x1.dtype
    assert jnp.allclose(out1, ref1, atol=1e-5, rtol=1e-5)

    # Case 2: unaligned shapes (padding path) + pre-subtracted weights.
    x2, w2, b2 = make_inputs(jax.random.fold_in(key, 2), 24, 48, 96)
    out2 = jax.block_until_ready(l1linear(x2, w2, b2, bias_factor=1.0, presubtract=True))
    ref2 = reference(x2, w2, b2, 1.0)
    assert out2.shape == ref2.shape and out2.dtype == x2.dtype
    assert jnp.allclose(out2, ref2, atol=1e-5, rtol=1e-5)

    print("KERNEL_OK")
</pallas_src>

<mosaic_0001>
module attributes {stable_mosaic.version = 11 : i64} {
  func.func @_l1linear_kernel_direct(%arg0: i32, %arg1: i32, %arg2: i32, %arg3: memref<16x128xf32, #tpu.memory_space<vmem>>, %arg4: memref<2x128x128xf32, #tpu.memory_space<vmem>>, %arg5: memref<1x128xf32, #tpu.memory_space<vmem>>, %arg6: memref<16x128xf32, #tpu.memory_space<vmem>>) attributes {dimension_semantics = [#tpu.dimension_semantics<parallel>, #tpu.dimension_semantics<parallel>, #tpu.dimension_semantics<arbitrary>], iteration_bounds = array<i64: 1, 1, 1>, scalar_prefetch = 0 : i64, scratch_operands = 0 : i64, tpu.core_type = #tpu.core_type<tc>, window_params = [{transform_indices = @transform_0, window_bounds = array<i64: 16, 128>}, {transform_indices = @transform_1, window_bounds = array<i64: 2, 128, 128>}, {transform_indices = @transform_2, window_bounds = array<i64: 1, 128>}, {transform_indices = @transform_3, window_bounds = array<i64: 16, 128>}]} {
    %c0_i32 = arith.constant 0 : i32
    %0 = arith.cmpi eq, %arg2, %c0_i32 : i32
    %1 = arith.extui %0 : i1 to i32
    %c0_i32_0 = arith.constant 0 : i32
    %2 = arith.cmpi ne, %1, %c0_i32_0 : i32
    scf.if %2 {
      %c0_11 = arith.constant 0 : index
      %c0_12 = arith.constant 0 : index
      %13 = vector.load %arg5[%c0_11, %c0_12] : memref<1x128xf32, #tpu.memory_space<vmem>>, vector<1x128xf32>
      %cst_13 = arith.constant 5.000000e-01 : f32
      %14 = vector.broadcast %cst_13 : f32 to vector<1x128xf32>
      %15 = arith.mulf %13, %14 : vector<1x128xf32>
      %16 = vector.shape_cast %15 : vector<1x128xf32> to vector<1x128xf32>
      %17 = vector.broadcast %16 : vector<1x128xf32> to vector<16x128xf32>
      %c0_14 = arith.constant 0 : index
      %c0_15 = arith.constant 0 : index
      %18 = vector.load %arg6[%c0_14, %c0_15] : memref<16x128xf32, #tpu.memory_space<vmem>>, vector<16x128xf32>
      tpu.vector_store %arg6[%c0_14, %c0_15], %17 {strides = array<i32>} : memref<16x128xf32, #tpu.memory_space<vmem>>, vector<16x128xf32>,
    } else {
    }
    %c0 = arith.constant 0 : index
    %c0_1 = arith.constant 0 : index
    %c0_2 = arith.constant 0 : index
    %3 = vector.load %arg4[%c0, %c0_1, %c0_2] : memref<2x128x128xf32, #tpu.memory_space<vmem>>, vector<1x128x128xf32>
    %4 = vector.shape_cast %3 : vector<1x128x128xf32> to vector<128x128xf32>
    %c1 = arith.constant 1 : index
    %c0_3 = arith.constant 0 : index
    %c0_4 = arith.constant 0 : index
    %5 = vector.load %arg4[%c1, %c0_3, %c0_4] : memref<2x128x128xf32, #tpu.memory_space<vmem>>, vector<1x128x128xf32>
    %6 = vector.shape_cast %5 : vector<1x128x128xf32> to vector<128x128xf32>
    %7 = arith.subf %4, %6 : vector<128x128xf32>
    %c0_5 = arith.constant 0 : index
    %c0_6 = arith.constant 0 : index
    %8 = vector.load %arg6[%c0_5, %c0_6] : memref<16x128xf32, #tpu.memory_space<vmem>>, vector<16x128xf32>
    %c0_7 = arith.constant 0 : index
    %c0_8 = arith.constant 0 : index
    %9 = vector.load %arg3[%c0_7, %c0_8] : memref<16x128xf32, #tpu.memory_space<vmem>>, vector<16x128xf32>
    %cst = arith.constant dense<0.000000e+00> : vector<16x128xf32>
    %10 = tpu.matmul %9, %7, %cst {dimension_numbers = #tpu.dot_dimension_numbers<[1], [0], [0], [1], [0, 0, 1, 1], [], []>, precision = #tpu.contract_precision<fp32>} : vector<16x128xf32>, vector<128x128xf32>, vector<16x128xf32> -> vector<16x128xf32>
    %11 = arith.addf %8, %10 : vector<16x128xf32>
    %c0_9 = arith.constant 0 : index
    %c0_10 = arith.constant 0 : index
    %12 = vector.load %arg6[%c0_9, %c0_10] : memref<16x128xf32, #tpu.memory_space<vmem>>, vector<16x128xf32>
    tpu.vector_store %arg6[%c0_9, %c0_10], %11 {strides = array<i32>} : memref<16x128xf32, #tpu.memory_space<vmem>>, vector<16x128xf32>,
    return
  }
  func.func @transform_0(%arg0: i32, %arg1: i32, %arg2: i32) -> (i32, i32) {
    %c0_i32 = arith.constant 0 : i32
    return %arg0, %arg2 : i32, i32
  }
  func.func @transform_1(%arg0: i32, %arg1: i32, %arg2: i32) -> (i32, i32, i32) {
    %c0_i32 = arith.constant 0 : i32
    %c0_i32_0 = arith.constant 0 : i32
    return %c0_i32, %arg2, %arg1 : i32, i32, i32
  }
  func.func @transform_2(%arg0: i32, %arg1: i32, %arg2: i32) -> (i32, i32) {
    %c0_i32 = arith.constant 0 : i32
    %c0_i32_0 = arith.constant 0 : i32
    return %c0_i32, %arg1 : i32, i32
  }
  func.func @transform_3(%arg0: i32, %arg1: i32, %arg2: i32) -> (i32, i32) {
    %c0_i32 = arith.constant 0 : i32
    return %arg0, %arg1 : i32, i32
  }
}

</mosaic_0001>

<llo_original>
// kernel: tpu_custom_call.1
$region0: #{tpu_custom_call.1}
  #allocation0 [shape = 'u32[]', space=smem, size = 0x4, offset = 0x4, fixed_abs, tag = 'smem constant byte address 0x4 - core index']
  #allocation1 [shape = 'u32[144,128]{1,0:T(1,128)}', space=vmem, size = 0x12000, scoped, tag = 'internal scratch']
  %s0 = inlined_call_operand.hbm [shape: f32[16,128], index: 0, kind: input, shape index: {}]
  %s1 = inlined_call_operand.hbm [shape: f32[2,128,128], index: 1, kind: input, shape index: {}]
  %s2 = inlined_call_operand.vmem [shape: f32[1,128], index: 2, kind: input, shape index: {}]
  %s3 = inlined_call_operand.hbm [shape: f32[16,128], index: 3, kind: output, shape index: {}]
  %s4 = sld [smem:[#allocation0]]
  $region34: #{tpu_custom_call.1} parent=0
    _
  %s6 = ssub.s32 1, %s4
  %s7 = scalar_select 0, %s6, %s4
  $region1: #{tpu_custom_call.1} parent=0
    #allocation2 [shape = 'u8[8192]{0}', space=vmem, size = 0x2000, scoped, tag = 'input window, operand 0, single buffered']
    #allocation3 [shape = 's32[1]{0}', space=sflag, size = 0x4, scoped, tag = 'scoped memory for tpu_custom_call.1']
    #allocation4 [shape = 's32[1]{0}', space=sflag, size = 0x4, scoped, tag = 'scoped memory for tpu_custom_call.1']
    #allocation5 [shape = 'u8[131072]{0}', space=vmem, size = 0x20000, scoped, tag = 'input window, operand 1, single buffered']
    #allocation6 [shape = 's32[1]{0}', space=sflag, size = 0x4, scoped, tag = 'scoped memory for tpu_custom_call.1']
    #allocation7 [shape = 'u8[8192]{0}', space=vmem, size = 0x2000, scoped, tag = 'output window, operand 0, single buffered']
    %8 = vsyncpa [#allocation3], 0
    %9 = vsyncpa [#allocation6], 0
    %10 = vsyncpa [#allocation4], 0
    // Predicated region
    $region2: #{tpu_custom_call.1} parent=1 // pred_check
      _
    $region3: #{tpu_custom_call.1} parent=1 // pred_check_branch
      %12 = sbr.rel (0) target = $region5
    $region4: #{tpu_custom_call.1} parent=1 // pred_region
      %s14 = ssub.s32 256, 256
      %15 = vsyncadd [#allocation3], %s14
      %s16 = sshll.u32 [#allocation2], 4
      %s17 = int_to_ptr.vmem [resolvable:$true] %s16
      %22 = dma.hbm_to_vmem [thread:$0]  %s0, 256, %s17, [#allocation3], 128, 128, 8
    $region5: #{tpu_custom_call.1} parent=1 // pred_fallthru
      _
    // Predicated region
    $region6: #{tpu_custom_call.1} parent=1 // pred_check
      _
    $region7: #{tpu_custom_call.1} parent=1 // pred_check_branch
      %24 = sbr.rel (0) target = $region9
    $region8: #{tpu_custom_call.1} parent=1 // pred_region
      %s26 = ssub.s32 4096, 4096
      %27 = vsyncadd [#allocation6], %s26
      %s28 = sshll.u32 [#allocation5], 4
      %s29 = int_to_ptr.vmem [resolvable:$true] %s28
      %34 = dma.hbm_to_vmem [thread:$0]  %s1, 4096, %s29, [#allocation6], 128, 128, 8
    $region9: #{tpu_custom_call.1} parent=1 // pred_fallthru
      _
    // Predicated region
    $region10: #{tpu_custom_call.1} parent=1 // pred_check
      _
    $region11: #{tpu_custom_call.1} parent=1 // pred_check_branch
      %36 = sbr.rel (0) target = $region13
    $region12: #{tpu_custom_call.1} parent=1 // pred_region
      _
    $region13: #{tpu_custom_call.1} parent=1 // pred_fallthru
      _
    // Predicated region
    $region14: #{tpu_custom_call.1} parent=1 // pred_check
      _
    $region15: #{tpu_custom_call.1} parent=1 // pred_check_branch
      %38 = sbr.rel (0) target = $region17
    $region16: #{tpu_custom_call.1} parent=1 // pred_region
      %39 = dma.done [#allocation3], 256
    $region17: #{tpu_custom_call.1} parent=1 // pred_fallthru
      _
    // Predicated region
    $region18: #{tpu_custom_call.1} parent=1 // pred_check
      _
    $region19: #{tpu_custom_call.1} parent=1 // pred_check_branch
      %41 = sbr.rel (0) target = $region21
    $region20: #{tpu_custom_call.1} parent=1 // pred_region
      %42 = dma.done [#allocation6], 4096
    $region21: #{tpu_custom_call.1} parent=1 // pred_fallthru
      _
    %p43 = scmp.eq.s32.totalorder 0, 0
    // Predicated region
    $region22: #{tpu_custom_call.1} parent=1 // pred_check
      %p44 = pneg %p43
    $region23: #{tpu_custom_call.1} parent=1 // pred_check_branch
      %46 = sbr.rel (%p44) target = $region25
    $region24: #{tpu_custom_call.1} parent=1 // pred_region
      %v47 = vld [vmem:[%s2] sm:$0x1]
      %v48 = vmul.f32 %v47, 0.5
      %v50 = vlaneseq
      %v51 = vshrl.u32 %v50, 7
      %v52 = vsub.s32 0, %v51
      %v53 = vrot.slane %v48, %v52
      %55 = vst [vmem:[#allocation7] sm:$0xff] %v53
      %56 = vst [vmem:[#allocation7 + $0x8] sm:$0xff] %v53
    $region25: #{tpu_custom_call.1} parent=1 // pred_fallthru
      _
    %v57 = vld [vmem:[#allocation5] sm:$0xff]
    %v58 = vld [vmem:[#allocation5 + $0x8] sm:$0xff]
    %v59 = vld [vmem:[#allocation5 + $0x10] sm:$0xff]
    %v60 = vld [vmem:[#allocation5 + $0x18] sm:$0xff]
    %v61 = vld [vmem:[#allocation5 + $0x20] sm:$0xff]
    %v62 = vld [vmem:[#allocation5 + $0x28] sm:$0xff]
    %v63 = vld [vmem:[#allocation5 + $0x30] sm:$0xff]
    %v64 = vld [vmem:[#allocation5 + $0x38] sm:$0xff]
    %v65 = vld [vmem:[#allocation5 + $0x40] sm:$0xff]
    %v66 = vld [vmem:[#allocation5 + $0x48] sm:$0xff]
    %v67 = vld [vmem:[#allocation5 + $0x50] sm:$0xff]
    %v68 = vld [vmem:[#allocation5 + $0x58] sm:$0xff]
    %v69 = vld [vmem:[#allocation5 + $0x60] sm:$0xff]
    %v70 = vld [vmem:[#allocation5 + $0x68] sm:$0xff]
    %v71 = vld [vmem:[#allocation5 + $0x70] sm:$0xff]
    %v72 = vld [vmem:[#allocation5 + $0x78] sm:$0xff]
    %s73 = scalar_lea.vmem [#allocation5], 128
    %v74 = vld [vmem:[%s73] sm:$0xff]
    %v75 = vld [vmem:[%s73 + $0x8] sm:$0xff]
    %v76 = vld [vmem:[%s73 + $0x10] sm:$0xff]
    %v77 = vld [vmem:[%s73 + $0x18] sm:$0xff]
    %v78 = vld [vmem:[%s73 + $0x20] sm:$0xff]
    %v79 = vld [vmem:[%s73 + $0x28] sm:$0xff]
    %v80 = vld [vmem:[%s73 + $0x30] sm:$0xff]
    %v81 = vld [vmem:[%s73 + $0x38] sm:$0xff]
    %v82 = vld [vmem:[%s73 + $0x40] sm:$0xff]
    %v83 = vld [vmem:[%s73 + $0x48] sm:$0xff]
    %v84 = vld [vmem:[%s73 + $0x50] sm:$0xff]
    %v85 = vld [vmem:[%s73 + $0x58] sm:$0xff]
    %v86 = vld [vmem:[%s73 + $0x60] sm:$0xff]
    %v87 = vld [vmem:[%s73 + $0x68] sm:$0xff]
    %v88 = vld [vmem:[%s73 + $0x70] sm:$0xff]
    %v89 = vld [vmem:[%s73 + $0x78] sm:$0xff]
    %v90 = vsub.f32 %v57, %v74
    %v91 = vsub.f32 %v58, %v75
    %v92 = vsub.f32 %v59, %v76
    %v93 = vsub.f32 %v60, %v77
    %v94 = vsub.f32 %v61, %v78
    %v95 = vsub.f32 %v62, %v79
    %v96 = vsub.f32 %v63, %v80
    %v97 = vsub.f32 %v64, %v81
    %v98 = vsub.f32 %v65, %v82
    %v99 = vsub.f32 %v66, %v83
    %v100 = vsub.f32 %v67, %v84
    %v101 = vsub.f32 %v68, %v85
    %v102 = vsub.f32 %v69, %v86
    %v103 = vsub.f32 %v70, %v87
    %v104 = vsub.f32 %v71, %v88
    %v105 = vsub.f32 %v72, %v89
    %v106 = vld [vmem:[#allocation7] sm:$0xff]
    %v107 = vld [vmem:[#allocation7 + $0x8] sm:$0xff]
    %v108 = vld [vmem:[#allocation2] sm:$0xff]
    %v109 = vld [vmem:[#allocation2 + $0x8] sm:$0xff]
    %110 = vmatprep.subr.mxu0 0.0
    %v111 = vand.u32 %v105, 4294901760
    %112 = vmatpush1.msra.mxu0 %v111
    %113 = vmatprep.subr.mxu0 0.0
    %v114 = vand.u32 %v104, 4294901760
    %115 = vmatpush1.msra.mxu0 %v114
    %116 = vmatprep.subr.mxu0 0.0
    %v117 = vand.u32 %v103, 4294901760
    %118 = vmatpush1.msra.mxu0 %v117
    %119 = vmatprep.subr.mxu0 0.0
    %v120 = vand.u32 %v102, 4294901760
    %121 = vmatpush1.msra.mxu0 %v120
    %122 = vmatprep.subr.mxu0 0.0
    %v123 = vand.u32 %v101, 4294901760
    %124 = vmatpush1.msra.mxu0 %v123
    %125 = vmatprep.subr.mxu0 0.0
    %v126 = vand.u32 %v100, 4294901760
    %127 = vmatpush1.msra.mxu0 %v126
    %128 = vmatprep.subr.mxu0 0.0
    %v129 = vand.u32 %v99, 4294901760
    %130 = vmatpush1.msra.mxu0 %v129
    %131 = vmatprep.subr.mxu0 0.0
    %v132 = vand.u32 %v98, 4294901760
    %133 = vmatpush1.msra.mxu0 %v132
    %134 = vmatprep.subr.mxu0 0.0
    %v135 = vand.u32 %v97, 4294901760
    %136 = vmatpush1.msra.mxu0 %v135
    %137 = vmatprep.subr.mxu0 0.0
    %v138 = vand.u32 %v96, 4294901760
    %139 = vmatpush1.msra.mxu0 %v138
    %140 = vmatprep.subr.mxu0 0.0
    %v141 = vand.u32 %v95, 4294901760
    %142 = vmatpush1.msra.mxu0 %v141
    %143 = vmatprep.subr.mxu0 0.0
    %v144 = vand.u32 %v94, 4294901760
    %145 = vmatpush1.msra.mxu0 %v144
    %146 = vmatprep.subr.mxu0 0.0
    %v147 = vand.u32 %v93, 4294901760
    %148 = vmatpush1.msra.mxu0 %v147
    %149 = vmatprep.subr.mxu0 0.0
    %v150 = vand.u32 %v92, 4294901760
    %151 = vmatpush1.msra.mxu0 %v150
    %152 = vmatprep.subr.mxu0 0.0
    %v153 = vand.u32 %v91, 4294901760
    %154 = vmatpush1.msra.mxu0 %v153
    %155 = vmatprep.subr.mxu0 0.0
    %v156 = vand.u32 %v90, 4294901760
    %157 = vmatpush1.msra.mxu0 %v156
    %158 = vmatprep.subr.mxu0 0.0
    %159 = vmatpush2.msra.mxu0 0.0
    %160 = vmatprep.subr.mxu0 0.0
    %161 = vmatpush2.msra.mxu0 0.0
    %162 = vmatprep.subr.mxu0 0.0
    %163 = vmatpush2.msra.mxu0 0.0
    %164 = vmatprep.subr.mxu0 0.0
    %165 = vmatpush2.msra.mxu0 0.0
    %166 = vmatprep.subr.mxu0 0.0
    %167 = vmatpush2.msra.mxu0 0.0
    %168 = vmatprep.subr.mxu0 0.0
    %169 = vmatpush2.msra.mxu0 0.0
    %170 = vmatprep.subr.mxu0 0.0
    %171 = vmatpush2.msra.mxu0 0.0
    %172 = vmatprep.subr.mxu0 0.0
    %173 = vmatpush2.msra.mxu0 0.0
    %174 = vmatprep.subr.mxu0 0.0
    %175 = vmatpush2.msra.mxu0 0.0
    %176 = vmatprep.subr.mxu0 0.0
    %177 = vmatpush2.msra.mxu0 0.0
    %178 = vmatprep.subr.mxu0 0.0
    %179 = vmatpush2.msra.mxu0 0.0
    %180 = vmatprep.subr.mxu0 0.0
    %181 = vmatpush2.msra.mxu0 0.0
    %182 = vmatprep.subr.mxu0 0.0
    %183 = vmatpush2.msra.mxu0 0.0
    %184 = vmatprep.subr.mxu0 0.0
    %185 = vmatpush2.msra.mxu0 0.0
    %186 = vmatprep.subr.mxu0 0.0
    %187 = vmatpush2.msra.mxu0 0.0
    %188 = vmatprep.subr.mxu0 0.0
    %189 = vmatpush2.msra.mxu0 0.0
    %190 = vmatprep.mubr.f32.mxu0 0.0
    %v191 = vand.u32 %v108, 4294901760
    %v192 = vsub.f32 %v108, %v191
    %v193 = vand.u32 %v192, 4294901760
    %v194 = vsub.f32 %v192, %v193
    %v195 = vand.u32 %v194, 4294901760
    %196 = vmatmul.mubr.f32.gmra.mxu0 %v195
    %v197 = vpop.f32.mrf.mxu0
    %v198 = vadd.f32 0.0, %v197
    %v199 = vpop.f32.mrf.mxu0
    %200 = vmatprep.mubr.f32.mxu0 0.0
    %v201 = vand.u32 %v109, 4294901760
    %v202 = vsub.f32 %v109, %v201
    %v203 = vand.u32 %v202, 4294901760
    %v204 = vsub.f32 %v202, %v203
    %v205 = vand.u32 %v204, 4294901760
    %206 = vmatmul.mubr.f32.gmra.mxu0 %v205
    %v207 = vpop.f32.mrf.mxu0
    %v208 = vadd.f32 0.0, %v207
    %v209 = vpop.f32.mrf.mxu0
    %210 = vdwg.mxu0
    %211 = vmatprep.subr.mxu0 0.0
    %v212 = vand.u32 %v105, 4294901760
    %v213 = vsub.f32 %v105, %v212
    %v214 = vand.u32 %v213, 4294901760
    %v215 = vsub.f32 %v213, %v214
    %v216 = vand.u32 %v215, 4294901760
    %217 = vmatpush1.msra.mxu0 %v216
    %218 = vmatprep.subr.mxu0 0.0
    %v219 = vand.u32 %v104, 4294901760
    %v220 = vsub.f32 %v104, %v219
    %v221 = vand.u32 %v220, 4294901760
    %v222 = vsub.f32 %v220, %v221
    %v223 = vand.u32 %v222, 4294901760
    %224 = vmatpush1.msra.mxu0 %v223
    %225 = vmatprep.subr.mxu0 0.0
    %v226 = vand.u32 %v103, 4294901760
    %v227 = vsub.f32 %v103, %v226
    %v228 = vand.u32 %v227, 4294901760
    %v229 = vsub.f32 %v227, %v228
    %v230 = vand.u32 %v229, 4294901760
    %231 = vmatpush1.msra.mxu0 %v230
    %232 = vmatprep.subr.mxu0 0.0
    %v233 = vand.u32 %v102, 4294901760
    %v234 = vsub.f32 %v102, %v233
    %v235 = vand.u32 %v234, 4294901760
    %v236 = vsub.f32 %v234, %v235
    %v237 = vand.u32 %v236, 4294901760
    %238 = vmatpush1.msra.mxu0 %v237
    %239 = vmatprep.subr.mxu0 0.0
    %v240 = vand.u32 %v101, 4294901760
    %v241 = vsub.f32 %v101, %v240
    %v242 = vand.u32 %v241, 4294901760
    %v243 = vsub.f32 %v241, %v242
    %v244 = vand.u32 %v243, 4294901760
    %245 = vmatpush1.msra.mxu0 %v244
    %246 = vmatprep.subr.mxu0 0.0
    %v247 = vand.u32 %v100, 4294901760
    %v248 = vsub.f32 %v100, %v247
    %v249 = vand.u32 %v248, 4294901760
    %v250 = vsub.f32 %v248, %v249
    %v251 = vand.u32 %v250, 4294901760
    %252 = vmatpush1.msra.mxu0 %v251
    %253 = vmatprep.subr.mxu0 0.0
    %v254 = vand.u32 %v99, 4294901760
    %v255 = vsub.f32 %v99, %v254
    %v256 = vand.u32 %v255, 4294901760
    %v257 = vsub.f32 %v255, %v256
    %v258 = vand.u32 %v257, 4294901760
    %259 = vmatpush1.msra.mxu0 %v258
    %260 = vmatprep.subr.mxu0 0.0
    %v261 = vand.u32 %v98, 4294901760
    %v262 = vsub.f32 %v98, %v261
    %v263 = vand.u32 %v262, 4294901760
    %v264 = vsub.f32 %v262, %v263
    %v265 = vand.u32 %v264, 4294901760
    %266 = vmatpush1.msra.mxu0 %v265
    %267 = vmatprep.subr.mxu0 0.0
    %v268 = vand.u32 %v97, 4294901760
    %v269 = vsub.f32 %v97, %v268
    %v270 = vand.u32 %v269, 4294901760
    %v271 = vsub.f32 %v269, %v270
    %v272 = vand.u32 %v271, 4294901760
    %273 = vmatpush1.msra.mxu0 %v272
    %274 = vmatprep.subr.mxu0 0.0
    %v275 = vand.u32 %v96, 4294901760
    %v276 = vsub.f32 %v96, %v275
    %v277 = vand.u32 %v276, 4294901760
    %v278 = vsub.f32 %v276, %v277
    %v279 = vand.u32 %v278, 4294901760
    %280 = vmatpush1.msra.mxu0 %v279
    %281 = vmatprep.subr.mxu0 0.0
    %v282 = vand.u32 %v95, 4294901760
    %v283 = vsub.f32 %v95, %v282
    %v284 = vand.u32 %v283, 4294901760
    %v285 = vsub.f32 %v283, %v284
    %v286 = vand.u32 %v285, 4294901760
    %287 = vmatpush1.msra.mxu0 %v286
    %288 = vmatprep.subr.mxu0 0.0
    %v289 = vand.u32 %v94, 4294901760
    %v290 = vsub.f32 %v94, %v289
    %v291 = vand.u32 %v290, 4294901760
    %v292 = vsub.f32 %v290, %v291
    %v293 = vand.u32 %v292, 4294901760
    %294 = vmatpush1.msra.mxu0 %v293
    %295 = vmatprep.subr.mxu0 0.0
    %v296 = vand.u32 %v93, 4294901760
    %v297 = vsub.f32 %v93, %v296
    %v298 = vand.u32 %v297, 4294901760
    %v299 = vsub.f32 %v297, %v298
    %v300 = vand.u32 %v299, 4294901760
    %301 = vmatpush1.msra.mxu0 %v300
    %302 = vmatprep.subr.mxu0 0.0
    %v303 = vand.u32 %v92, 4294901760
    %v304 = vsub.f32 %v92, %v303
    %v305 = vand.u32 %v304, 4294901760
    %v306 = vsub.f32 %v304, %v305
    %v307 = vand.u32 %v306, 4294901760
    %308 = vmatpush1.msra.mxu0 %v307
    %309 = vmatprep.subr.mxu0 0.0
    %v310 = vand.u32 %v91, 4294901760
    %v311 = vsub.f32 %v91, %v310
    %v312 = vand.u32 %v311, 4294901760
    %v313 = vsub.f32 %v311, %v312
    %v314 = vand.u32 %v313, 4294901760
    %315 = vmatpush1.msra.mxu0 %v314
    %316 = vmatprep.subr.mxu0 0.0
    %v317 = vand.u32 %v90, 4294901760
    %v318 = vsub.f32 %v90, %v317
    %v319 = vand.u32 %v318, 4294901760
    %v320 = vsub.f32 %v318, %v319
    %v321 = vand.u32 %v320, 4294901760
    %322 = vmatpush1.msra.mxu0 %v321
    %323 = vmatprep.subr.mxu0 0.0
    %324 = vmatpush2.msra.mxu0 0.0
    %325 = vmatprep.subr.mxu0 0.0
    %326 = vmatpush2.msra.mxu0 0.0
    %327 = vmatprep.subr.mxu0 0.0
    %328 = vmatpush2.msra.mxu0 0.0
    %329 = vmatprep.subr.mxu0 0.0
    %330 = vmatpush2.msra.mxu0 0.0
    %331 = vmatprep.subr.mxu0 0.0
    %332 = vmatpush2.msra.mxu0 0.0
    %333 = vmatprep.subr.mxu0 0.0
    %334 = vmatpush2.msra.mxu0 0.0
    %335 = vmatprep.subr.mxu0 0.0
    %336 = vmatpush2.msra.mxu0 0.0
    %337 = vmatprep.subr.mxu0 0.0
    %338 = vmatpush2.msra.mxu0 0.0
    %339 = vmatprep.subr.mxu0 0.0
    %340 = vmatpush2.msra.mxu0 0.0
    %341 = vmatprep.subr.mxu0 0.0
    %342 = vmatpush2.msra.mxu0 0.0
    %343 = vmatprep.subr.mxu0 0.0
    %344 = vmatpush2.msra.mxu0 0.0
    %345 = vmatprep.subr.mxu0 0.0
    %346 = vmatpush2.msra.mxu0 0.0
    %347 = vmatprep.subr.mxu0 0.0
    %348 = vmatpush2.msra.mxu0 0.0
    %349 = vmatprep.subr.mxu0 0.0
    %350 = vmatpush2.msra.mxu0 0.0
    %351 = vmatprep.subr.mxu0 0.0
    %352 = vmatpush2.msra.mxu0 0.0
    %353 = vmatprep.subr.mxu0 0.0
    %354 = vmatpush2.msra.mxu0 0.0
    %355 = vmatprep.mubr.f32.mxu0 0.0
    %v356 = vand.u32 %v108, 4294901760
    %357 = vmatmul.mubr.f32.gmra.mxu0 %v356
    %v358 = vpop.f32.mrf.mxu0
    %v359 = vadd.f32 %v198, %v358
    %v360 = vpop.f32.mrf.mxu0
    %361 = vmatprep.mubr.f32.mxu0 0.0
    %v362 = vand.u32 %v109, 4294901760
    %363 = vmatmul.mubr.f32.gmra.mxu0 %v362
    %v364 = vpop.f32.mrf.mxu0
    %v365 = vadd.f32 %v208, %v364
    %v366 = vpop.f32.mrf.mxu0
    %367 = vdwg.mxu0
    %368 = vmatprep.subr.mxu0 0.0
    %v369 = vand.u32 %v105, 4294901760
    %v370 = vsub.f32 %v105, %v369
    %371 = vmatpush1.msra.mxu0 %v370
    %372 = vmatprep.subr.mxu0 0.0
    %v373 = vand.u32 %v104, 4294901760
    %v374 = vsub.f32 %v104, %v373
    %375 = vmatpush1.msra.mxu0 %v374
    %376 = vmatprep.subr.mxu0 0.0
    %v377 = vand.u32 %v103, 4294901760
    %v378 = vsub.f32 %v103, %v377
    %379 = vmatpush1.msra.mxu0 %v378
    %380 = vmatprep.subr.mxu0 0.0
    %v381 = vand.u32 %v102, 4294901760
    %v382 = vsub.f32 %v102, %v381
    %383 = vmatpush1.msra.mxu0 %v382
    %384 = vmatprep.subr.mxu0 0.0
    %v385 = vand.u32 %v101, 4294901760
    %v386 = vsub.f32 %v101, %v385
    %387 = vmatpush1.msra.mxu0 %v386
    %388 = vmatprep.subr.mxu0 0.0
    %v389 = vand.u32 %v100, 4294901760
    %v390 = vsub.f32 %v100, %v389
    %391 = vmatpush1.msra.mxu0 %v390
    %392 = vmatprep.subr.mxu0 0.0
    %v393 = vand.u32 %v99, 4294901760
    %v394 = vsub.f32 %v99, %v393
    %395 = vmatpush1.msra.mxu0 %v394
    %396 = vmatprep.subr.mxu0 0.0
    %v397 = vand.u32 %v98, 4294901760
    %v398 = vsub.f32 %v98, %v397
    %399 = vmatpush1.msra.mxu0 %v398
    %400 = vmatprep.subr.mxu0 0.0
    %v401 = vand.u32 %v97, 4294901760
    %v402 = vsub.f32 %v97, %v401
    %403 = vmatpush1.msra.mxu0 %v402
    %404 = vmatprep.subr.mxu0 0.0
    %v405 = vand.u32 %v96, 4294901760
    %v406 = vsub.f32 %v96, %v405
    %407 = vmatpush1.msra.mxu0 %v406
    %408 = vmatprep.subr.mxu0 0.0
    %v409 = vand.u32 %v95, 4294901760
    %v410 = vsub.f32 %v95, %v409
    %411 = vmatpush1.msra.mxu0 %v410
    %412 = vmatprep.subr.mxu0 0.0
    %v413 = vand.u32 %v94, 4294901760
    %v414 = vsub.f32 %v94, %v413
    %415 = vmatpush1.msra.mxu0 %v414
    %416 = vmatprep.subr.mxu0 0.0
    %v417 = vand.u32 %v93, 4294901760
    %v418 = vsub.f32 %v93, %v417
    %419 = vmatpush1.msra.mxu0 %v418
    %420 = vmatprep.subr.mxu0 0.0
    %v421 = vand.u32 %v92, 4294901760
    %v422 = vsub.f32 %v92, %v421
    %423 = vmatpush1.msra.mxu0 %v422
    %424 = vmatprep.subr.mxu0 0.0
    %v425 = vand.u32 %v91, 4294901760
    %v426 = vsub.f32 %v91, %v425
    %427 = vmatpush1.msra.mxu0 %v426
    %428 = vmatprep.subr.mxu0 0.0
    %v429 = vand.u32 %v90, 4294901760
    %v430 = vsub.f32 %v90, %v429
    %431 = vmatpush1.msra.mxu0 %v430
    %432 = vmatprep.subr.mxu0 0.0
    %433 = vmatpush2.msra.mxu0 0.0
    %434 = vmatprep.subr.mxu0 0.0
    %435 = vmatpush2.msra.mxu0 0.0
    %436 = vmatprep.subr.mxu0 0.0
    %437 = vmatpush2.msra.mxu0 0.0
    %438 = vmatprep.subr.mxu0 0.0
    %439 = vmatpush2.msra.mxu0 0.0
    %440 = vmatprep.subr.mxu0 0.0
    %441 = vmatpush2.msra.mxu0 0.0
    %442 = vmatprep.subr.mxu0 0.0
    %443 = vmatpush2.msra.mxu0 0.0
    %444 = vmatprep.subr.mxu0 0.0
    %445 = vmatpush2.msra.mxu0 0.0
    %446 = vmatprep.subr.mxu0 0.0
    %447 = vmatpush2.msra.mxu0 0.0
    %448 = vmatprep.subr.mxu0 0.0
    %449 = vmatpush2.msra.mxu0 0.0
    %450 = vmatprep.subr.mxu0 0.0
    %451 = vmatpush2.msra.mxu0 0.0
    %452 = vmatprep.subr.mxu0 0.0
    %453 = vmatpush2.msra.mxu0 0.0
    %454 = vmatprep.subr.mxu0 0.0
    %455 = vmatpush2.msra.mxu0 0.0
    %456 = vmatprep.subr.mxu0 0.0
    %457 = vmatpush2.msra.mxu0 0.0
    %458 = vmatprep.subr.mxu0 0.0
    %459 = vmatpush2.msra.mxu0 0.0
    %460 = vmatprep.subr.mxu0 0.0
    %461 = vmatpush2.msra.mxu0 0.0
    %462 = vmatprep.subr.mxu0 0.0
    %463 = vmatpush2.msra.mxu0 0.0
    %464 = vmatprep.mubr.f32.mxu0 0.0
    %v465 = vand.u32 %v108, 4294901760
    %v466 = vsub.f32 %v108, %v465
    %467 = vmatmul.mubr.f32.gmra.mxu0 %v466
    %v468 = vpop.f32.mrf.mxu0
    %v469 = vadd.f32 %v359, %v468
    %v470 = vpop.f32.mrf.mxu0
    %471 = vmatprep.mubr.f32.mxu0 0.0
    %v472 = vand.u32 %v109, 4294901760
    %v473 = vsub.f32 %v109, %v472
    %474 = vmatmul.mubr.f32.gmra.mxu0 %v473
    %v475 = vpop.f32.mrf.mxu0
    %v476 = vadd.f32 %v365, %v475
    %v477 = vpop.f32.mrf.mxu0
    %478 = vdwg.mxu0
    %479 = vmatprep.subr.mxu0 0.0
    %v480 = vand.u32 %v105, 4294901760
    %481 = vmatpush1.msra.mxu0 %v480
    %482 = vmatprep.subr.mxu0 0.0
    %v483 = vand.u32 %v104, 4294901760
    %484 = vmatpush1.msra.mxu0 %v483
    %485 = vmatprep.subr.mxu0 0.0
    %v486 = vand.u32 %v103, 4294901760
    %487 = vmatpush1.msra.mxu0 %v486
    %488 = vmatprep.subr.mxu0 0.0
    %v489 = vand.u32 %v102, 4294901760
    %490 = vmatpush1.msra.mxu0 %v489
    %491 = vmatprep.subr.mxu0 0.0
    %v492 = vand.u32 %v101, 4294901760
    %493 = vmatpush1.msra.mxu0 %v492
    %494 = vmatprep.subr.mxu0 0.0
    %v495 = vand.u32 %v100, 4294901760
    %496 = vmatpush1.msra.mxu0 %v495
    %497 = vmatprep.subr.mxu0 0.0
    %v498 = vand.u32 %v99, 4294901760
    %499 = vmatpush1.msra.mxu0 %v498
    %500 = vmatprep.subr.mxu0 0.0
    %v501 = vand.u32 %v98, 4294901760
    %502 = vmatpush1.msra.mxu0 %v501
    %503 = vmatprep.subr.mxu0 0.0
    %v504 = vand.u32 %v97, 4294901760
    %505 = vmatpush1.msra.mxu0 %v504
    %506 = vmatprep.subr.mxu0 0.0
    %v507 = vand.u32 %v96, 4294901760
    %508 = vmatpush1.msra.mxu0 %v507
    %509 = vmatprep.subr.mxu0 0.0
    %v510 = vand.u32 %v95, 4294901760
    %511 = vmatpush1.msra.mxu0 %v510
    %512 = vmatprep.subr.mxu0 0.0
    %v513 = vand.u32 %v94, 4294901760
    %514 = vmatpush1.msra.mxu0 %v513
    %515 = vmatprep.subr.mxu0 0.0
    %v516 = vand.u32 %v93, 4294901760
    %517 = vmatpush1.msra.mxu0 %v516
    %518 = vmatprep.subr.mxu0 0.0
    %v519 = vand.u32 %v92, 4294901760
    %520 = vmatpush1.msra.mxu0 %v519
    %521 = vmatprep.subr.mxu0 0.0
    %v522 = vand.u32 %v91, 4294901760
    %523 = vmatpush1.msra.mxu0 %v522
    %524 = vmatprep.subr.mxu0 0.0
    %v525 = vand.u32 %v90, 4294901760
    %526 = vmatpush1.msra.mxu0 %v525
    %527 = vmatprep.subr.mxu0 0.0
    %528 = vmatpush2.msra.mxu0 0.0
    %529 = vmatprep.subr.mxu0 0.0
    %530 = vmatpush2.msra.mxu0 0.0
    %531 = vmatprep.subr.mxu0 0.0
    %532 = vmatpush2.msra.mxu0 0.0
    %533 = vmatprep.subr.mxu0 0.0
    %534 = vmatpush2.msra.mxu0 0.0
    %535 = vmatprep.subr.mxu0 0.0
    %536 = vmatpush2.msra.mxu0 0.0
    %537 = vmatprep.subr.mxu0 0.0
    %538 = vmatpush2.msra.mxu0 0.0
    %539 = vmatprep.subr.mxu0 0.0
    %540 = vmatpush2.msra.mxu0 0.0
    %541 = vmatprep.subr.mxu0 0.0
    %542 = vmatpush2.msra.mxu0 0.0
    %543 = vmatprep.subr.mxu0 0.0
    %544 = vmatpush2.msra.mxu0 0.0
    %545 = vmatprep.subr.mxu0 0.0
    %546 = vmatpush2.msra.mxu0 0.0
    %547 = vmatprep.subr.mxu0 0.0
    %548 = vmatpush2.msra.mxu0 0.0
    %549 = vmatprep.subr.mxu0 0.0
    %550 = vmatpush2.msra.mxu0 0.0
    %551 = vmatprep.subr.mxu0 0.0
    %552 = vmatpush2.msra.mxu0 0.0
    %553 = vmatprep.subr.mxu0 0.0
    %554 = vmatpush2.msra.mxu0 0.0
    %555 = vmatprep.subr.mxu0 0.0
    %556 = vmatpush2.msra.mxu0 0.0
    %557 = vmatprep.subr.mxu0 0.0
    %558 = vmatpush2.msra.mxu0 0.0
    %559 = vmatprep.mubr.f32.mxu0 0.0
    %v560 = vand.u32 %v108, 4294901760
    %v561 = vsub.f32 %v108, %v560
    %v562 = vand.u32 %v561, 4294901760
    %563 = vmatmul.mubr.f32.gmra.mxu0 %v562
    %v564 = vpop.f32.mrf.mxu0
    %v565 = vadd.f32 %v469, %v564
    %v566 = vpop.f32.mrf.mxu0
    %567 = vmatprep.mubr.f32.mxu0 0.0
    %v568 = vand.u32 %v109, 4294901760
    %v569 = vsub.f32 %v109, %v568
    %v570 = vand.u32 %v569, 4294901760
    %571 = vmatmul.mubr.f32.gmra.mxu0 %v570
    %v572 = vpop.f32.mrf.mxu0
    %v573 = vadd.f32 %v476, %v572
    %v574 = vpop.f32.mrf.mxu0
    %575 = vdwg.mxu0
    %576 = vmatprep.subr.mxu0 0.0
    %v577 = vand.u32 %v105, 4294901760
    %v578 = vsub.f32 %v105, %v577
    %v579 = vand.u32 %v578, 4294901760
    %580 = vmatpush1.msra.mxu0 %v579
    %581 = vmatprep.subr.mxu0 0.0
    %v582 = vand.u32 %v104, 4294901760
    %v583 = vsub.f32 %v104, %v582
    %v584 = vand.u32 %v583, 4294901760
    %585 = vmatpush1.msra.mxu0 %v584
    %586 = vmatprep.subr.mxu0 0.0
    %v587 = vand.u32 %v103, 4294901760
    %v588 = vsub.f32 %v103, %v587
    %v589 = vand.u32 %v588, 4294901760
    %590 = vmatpush1.msra.mxu0 %v589
    %591 = vmatprep.subr.mxu0 0.0
    %v592 = vand.u32 %v102, 4294901760
    %v593 = vsub.f32 %v102, %v592
    %v594 = vand.u32 %v593, 4294901760
    %595 = vmatpush1.msra.mxu0 %v594
    %596 = vmatprep.subr.mxu0 0.0
    %v597 = vand.u32 %v101, 4294901760
    %v598 = vsub.f32 %v101, %v597
    %v599 = vand.u32 %v598, 4294901760
    %600 = vmatpush1.msra.mxu0 %v599
    %601 = vmatprep.subr.mxu0 0.0
    %v602 = vand.u32 %v100, 4294901760
    %v603 = vsub.f32 %v100, %v602
    %v604 = vand.u32 %v603, 4294901760
    %605 = vmatpush1.msra.mxu0 %v604
    %606 = vmatprep.subr.mxu0 0.0
    %v607 = vand.u32 %v99, 4294901760
    %v608 = vsub.f32 %v99, %v607
    %v609 = vand.u32 %v608, 4294901760
    %610 = vmatpush1.msra.mxu0 %v609
    %611 = vmatprep.subr.mxu0 0.0
    %v612 = vand.u32 %v98, 4294901760
    %v613 = vsub.f32 %v98, %v612
    %v614 = vand.u32 %v613, 4294901760
    %615 = vmatpush1.msra.mxu0 %v614
    %616 = vmatprep.subr.mxu0 0.0
    %v617 = vand.u32 %v97, 4294901760
    %v618 = vsub.f32 %v97, %v617
    %v619 = vand.u32 %v618, 4294901760
    %620 = vmatpush1.msra.mxu0 %v619
    %621 = vmatprep.subr.mxu0 0.0
    %v622 = vand.u32 %v96, 4294901760
    %v623 = vsub.f32 %v96, %v622
    %v624 = vand.u32 %v623, 4294901760
    %625 = vmatpush1.msra.mxu0 %v624
    %626 = vmatprep.subr.mxu0 0.0
    %v627 = vand.u32 %v95, 4294901760
    %v628 = vsub.f32 %v95, %v627
    %v629 = vand.u32 %v628, 4294901760
    %630 = vmatpush1.msra.mxu0 %v629
    %631 = vmatprep.subr.mxu0 0.0
    %v632 = vand.u32 %v94, 4294901760
    %v633 = vsub.f32 %v94, %v632
    %v634 = vand.u32 %v633, 4294901760
    %635 = vmatpush1.msra.mxu0 %v634
    %636 = vmatprep.subr.mxu0 0.0
    %v637 = vand.u32 %v93, 4294901760
    %v638 = vsub.f32 %v93, %v637
    %v639 = vand.u32 %v638, 4294901760
    %640 = vmatpush1.msra.mxu0 %v639
    %641 = vmatprep.subr.mxu0 0.0
    %v642 = vand.u32 %v92, 4294901760
    %v643 = vsub.f32 %v92, %v642
    %v644 = vand.u32 %v643, 4294901760
    %645 = vmatpush1.msra.mxu0 %v644
    %646 = vmatprep.subr.mxu0 0.0
    %v647 = vand.u32 %v91, 4294901760
    %v648 = vsub.f32 %v91, %v647
    %v649 = vand.u32 %v648, 4294901760
    %650 = vmatpush1.msra.mxu0 %v649
    %651 = vmatprep.subr.mxu0 0.0
    %v652 = vand.u32 %v90, 4294901760
    %v653 = vsub.f32 %v90, %v652
    %v654 = vand.u32 %v653, 4294901760
    %655 = vmatpush1.msra.mxu0 %v654
    %656 = vmatprep.subr.mxu0 0.0
    %657 = vmatpush2.msra.mxu0 0.0
    %658 = vmatprep.subr.mxu0 0.0
    %659 = vmatpush2.msra.mxu0 0.0
    %660 = vmatprep.subr.mxu0 0.0
    %661 = vmatpush2.msra.mxu0 0.0
    %662 = vmatprep.subr.mxu0 0.0
    %663 = vmatpush2.msra.mxu0 0.0
    %664 = vmatprep.subr.mxu0 0.0
    %665 = vmatpush2.msra.mxu0 0.0
    %666 = vmatprep.subr.mxu0 0.0
    %667 = vmatpush2.msra.mxu0 0.0
    %668 = vmatprep.subr.mxu0 0.0
    %669 = vmatpush2.msra.mxu0 0.0
    %670 = vmatprep.subr.mxu0 0.0
    %671 = vmatpush2.msra.mxu0 0.0
    %672 = vmatprep.subr.mxu0 0.0
    %673 = vmatpush2.msra.mxu0 0.0
    %674 = vmatprep.subr.mxu0 0.0
    %675 = vmatpush2.msra.mxu0 0.0
    %676 = vmatprep.subr.mxu0 0.0
    %677 = vmatpush2.msra.mxu0 0.0
    %678 = vmatprep.subr.mxu0 0.0
    %679 = vmatpush2.msra.mxu0 0.0
    %680 = vmatprep.subr.mxu0 0.0
    %681 = vmatpush2.msra.mxu0 0.0
    %682 = vmatprep.subr.mxu0 0.0
    %683 = vmatpush2.msra.mxu0 0.0
    %684 = vmatprep.subr.mxu0 0.0
    %685 = vmatpush2.msra.mxu0 0.0
    %686 = vmatprep.subr.mxu0 0.0
    %687 = vmatpush2.msra.mxu0 0.0
    %688 = vmatprep.mubr.f32.mxu0 0.0
    %v689 = vand.u32 %v108, 4294901760
    %690 = vmatmul.mubr.f32.gmra.mxu0 %v689
    %v691 = vpop.f32.mrf.mxu0
    %v692 = vadd.f32 %v565, %v691
    %v693 = vpop.f32.mrf.mxu0
    %694 = vmatprep.mubr.f32.mxu0 0.0
    %v695 = vand.u32 %v109, 4294901760
    %696 = vmatmul.mubr.f32.gmra.mxu0 %v695
    %v697 = vpop.f32.mrf.mxu0
    %v698 = vadd.f32 %v573, %v697
    %v699 = vpop.f32.mrf.mxu0
    %700 = vdwg.mxu0
    %701 = vmatprep.subr.mxu0 0.0
    %v702 = vand.u32 %v105, 4294901760
    %703 = vmatpush1.msra.mxu0 %v702
    %704 = vmatprep.subr.mxu0 0.0
    %v705 = vand.u32 %v104, 4294901760
    %706 = vmatpush1.msra.mxu0 %v705
    %707 = vmatprep.subr.mxu0 0.0
    %v708 = vand.u32 %v103, 4294901760
    %709 = vmatpush1.msra.mxu0 %v708
    %710 = vmatprep.subr.mxu0 0.0
    %v711 = vand.u32 %v102, 4294901760
    %712 = vmatpush1.msra.mxu0 %v711
    %713 = vmatprep.subr.mxu0 0.0
    %v714 = vand.u32 %v101, 4294901760
    %715 = vmatpush1.msra.mxu0 %v714
    %716 = vmatprep.subr.mxu0 0.0
    %v717 = vand.u32 %v100, 4294901760
    %718 = vmatpush1.msra.mxu0 %v717
    %719 = vmatprep.subr.mxu0 0.0
    %v720 = vand.u32 %v99, 4294901760
    %721 = vmatpush1.msra.mxu0 %v720
    %722 = vmatprep.subr.mxu0 0.0
    %v723 = vand.u32 %v98, 4294901760
    %724 = vmatpush1.msra.mxu0 %v723
    %725 = vmatprep.subr.mxu0 0.0
    %v726 = vand.u32 %v97, 4294901760
    %727 = vmatpush1.msra.mxu0 %v726
    %728 = vmatprep.subr.mxu0 0.0
    %v729 = vand.u32 %v96, 4294901760
    %730 = vmatpush1.msra.mxu0 %v729
    %731 = vmatprep.subr.mxu0 0.0
    %v732 = vand.u32 %v95, 4294901760
    %733 = vmatpush1.msra.mxu0 %v732
    %734 = vmatprep.subr.mxu0 0.0
    %v735 = vand.u32 %v94, 4294901760
    %736 = vmatpush1.msra.mxu0 %v735
    %737 = vmatprep.subr.mxu0 0.0
    %v738 = vand.u32 %v93, 4294901760
    %739 = vmatpush1.msra.mxu0 %v738
    %740 = vmatprep.subr.mxu0 0.0
    %v741 = vand.u32 %v92, 4294901760
    %742 = vmatpush1.msra.mxu0 %v741
    %743 = vmatprep.subr.mxu0 0.0
    %v744 = vand.u32 %v91, 4294901760
    %745 = vmatpush1.msra.mxu0 %v744
    %746 = vmatprep.subr.mxu0 0.0
    %v747 = vand.u32 %v90, 4294901760
    %748 = vmatpush1.msra.mxu0 %v747
    %749 = vmatprep.subr.mxu0 0.0
    %750 = vmatpush2.msra.mxu0 0.0
    %751 = vmatprep.subr.mxu0 0.0
    %752 = vmatpush2.msra.mxu0 0.0
    %753 = vmatprep.subr.mxu0 0.0
    %754 = vmatpush2.msra.mxu0 0.0
    %755 = vmatprep.subr.mxu0 0.0
    %756 = vmatpush2.msra.mxu0 0.0
    %757 = vmatprep.subr.mxu0 0.0
    %758 = vmatpush2.msra.mxu0 0.0
    %759 = vmatprep.subr.mxu0 0.0
    %760 = vmatpush2.msra.mxu0 0.0
    %761 = vmatprep.subr.mxu0 0.0
    %762 = vmatpush2.msra.mxu0 0.0
    %763 = vmatprep.subr.mxu0 0.0
    %764 = vmatpush2.msra.mxu0 0.0
    %765 = vmatprep.subr.mxu0 0.0
    %766 = vmatpush2.msra.mxu0 0.0
    %767 = vmatprep.subr.mxu0 0.0
    %768 = vmatpush2.msra.mxu0 0.0
    %769 = vmatprep.subr.mxu0 0.0
    %770 = vmatpush2.msra.mxu0 0.0
    %771 = vmatprep.subr.mxu0 0.0
    %772 = vmatpush2.msra.mxu0 0.0
    %773 = vmatprep.subr.mxu0 0.0
    %774 = vmatpush2.msra.mxu0 0.0
    %775 = vmatprep.subr.mxu0 0.0
    %776 = vmatpush2.msra.mxu0 0.0
    %777 = vmatprep.subr.mxu0 0.0
    %778 = vmatpush2.msra.mxu0 0.0
    %779 = vmatprep.subr.mxu0 0.0
    %780 = vmatpush2.msra.mxu0 0.0
    %781 = vmatprep.mubr.f32.mxu0 0.0
    %v782 = vand.u32 %v108, 4294901760
    %783 = vmatmul.mubr.f32.gmra.mxu0 %v782
    %v784 = vpop.f32.mrf.mxu0
    %v785 = vadd.f32 %v692, %v784
    %v786 = vpop.f32.mrf.mxu0
    %787 = vmatprep.mubr.f32.mxu0 0.0
    %v788 = vand.u32 %v109, 4294901760
    %789 = vmatmul.mubr.f32.gmra.mxu0 %v788
    %v790 = vpop.f32.mrf.mxu0
    %v791 = vadd.f32 %v698, %v790
    %v792 = vpop.f32.mrf.mxu0
    %793 = vdwg.mxu0
    %v794 = vadd.f32 %v106, %v785
    %v795 = vadd.f32 %v107, %v791
    %796 = vst [vmem:[#allocation7] sm:$0xff] %v794
    %797 = vst [vmem:[#allocation7 + $0x8] sm:$0xff] %v795
    // Predicated region
    $region26: #{tpu_custom_call.1} parent=1 // pred_check
      _
    $region27: #{tpu_custom_call.1} parent=1 // pred_check_branch
      %799 = sbr.rel (0) target = $region29
    $region28: #{tpu_custom_call.1} parent=1 // pred_region
      %s801 = ssub.s32 256, 256
      %802 = vsyncadd [#allocation4], %s801
      %s803 = sshll.u32 [#allocation7], 4
      %s804 = int_to_ptr.vmem [resolvable:$true] %s803
      %809 = dma.vmem_to_hbm [thread:$0]  %s804, 256, %s3, [#allocation4], 128, 128, 8
    $region29: #{tpu_custom_call.1} parent=1 // pred_fallthru
      _
    // Predicated region
    $region30: #{tpu_custom_call.1} parent=1 // pred_check
      _
    $region31: #{tpu_custom_call.1} parent=1 // pred_check_branch
      %811 = sbr.rel (0) target = $region33
    $region32: #{tpu_custom_call.1} parent=1 // pred_region
      %812 = dma.done [#allocation4], 256
    $region33: #{tpu_custom_call.1} parent=1 // pred_fallthru
      _
    %813 = vsyncpa [#allocation3], 1
    %814 = vsyncpa [#allocation6], 1
    %815 = vsyncpa [#allocation4], 1

</llo_original>
